<compile_context>
chip_gen: v5e
topology: v5e:2x2
jax: 0.10.0
libtpu: 0.0.40
codegen_flags: <defaults>
</compile_context>

<pallas_src>
import jax
import jax.numpy as jnp
from jax.experimental import pallas as pl
from jax.experimental.pallas import tpu as pltpu


def _round_up(n, m):
    return ((n + m - 1) // m) * m


def qnet2_fused_kernel(xa_ref, w1_ref, w2_ref, w3_ref, b_ref, out_ref):
    xa = xa_ref[...]          # [TB, 4]
    b = b_ref[...]            # [3, 128]  rows: b1, b2, b3(padded)

    # Layer 1: fused (fc_sA|fc_aA|fc_sB|fc_aB) -> [TB, 128] == [catA | catB]
    h = jnp.dot(xa, w1_ref[...], preferred_element_type=jnp.float32) + b[0:1, :]
    h = jnp.maximum(h, 0.0)

    # Layer 2: fused (fc_qA, fc_qB) block-diagonal -> [TB, 128] == [qA | qB]
    g = jnp.dot(h, w2_ref[...], preferred_element_type=jnp.float32) + b[1:2, :]
    g = jnp.maximum(g, 0.0)

    # Layer 3: fused (fc_outA, fc_outB), zero-padded to 128 lanes for an
    # unmasked, lane-dense store. Column 0 = q1, column 1 = q2.
    out_ref[...] = (jnp.dot(g, w3_ref[...], preferred_element_type=jnp.float32)
                    + b[2:3, :])


def pack_params(p):
    """Pack the 16 per-layer tensors into 4 fused arrays (done once)."""
    f32 = jnp.float32

    def w1_branch(ws, wa):
        w = jnp.zeros((4, 64), f32)
        w = w.at[0:3, 0:32].set(ws)      # state rows -> first 32 cols
        w = w.at[3:4, 32:64].set(wa)     # action row -> last 32 cols
        return w

    w1 = jnp.concatenate(
        [w1_branch(p["wsA"], p["waA"]), w1_branch(p["wsB"], p["waB"])], axis=1)
    b1 = jnp.concatenate([p["bsA"], p["baA"], p["bsB"], p["baB"]], axis=1)

    w2 = jnp.zeros((128, 128), f32)
    w2 = w2.at[0:64, 0:64].set(p["wqA"])
    w2 = w2.at[64:128, 64:128].set(p["wqB"])
    b2 = jnp.concatenate([p["bqA"], p["bqB"]], axis=1)

    w3 = jnp.zeros((128, 128), f32)
    w3 = w3.at[0:64, 0:1].set(p["woA"])
    w3 = w3.at[64:128, 1:2].set(p["woB"])
    b3 = jnp.zeros((1, 128), f32)
    b3 = b3.at[0, 0].set(p["boA"][0, 0])
    b3 = b3.at[0, 1].set(p["boB"][0, 0])

    biases = jnp.concatenate([b1, b2, b3], axis=0)   # [3, 128]
    return {"w1": w1, "w2": w2, "w3": w3, "b": biases}


def qnet2_forward(x, a, packed):
    """x: [B, 3] f32, a: [B, 1] f32. Returns (q1, q2), each [B, 1]."""
    B = x.shape[0]
    xa = jnp.concatenate([x, a], axis=1).astype(jnp.float32)   # [B, 4]

    # Batch tiling: single block for small B, 512-row tiles for replay batches.
    TB = 512 if B >= 512 else _round_up(B, 8)
    B_pad = _round_up(B, TB)
    if B_pad != B:
        xa = jnp.pad(xa, ((0, B_pad - B), (0, 0)))
    grid = (B_pad // TB,)

    flops = 2 * B_pad * (4 * 128 + 128 * 128 + 128 * 128)
    bytes_accessed = 4 * (B_pad * 4 + 4 * 128 + 2 * 128 * 128 + 3 * 128
                          + B_pad * 128)

    out = pl.pallas_call(
        qnet2_fused_kernel,
        out_shape=jax.ShapeDtypeStruct((B_pad, 128), jnp.float32),
        grid_spec=pltpu.PrefetchScalarGridSpec(
            num_scalar_prefetch=0,
            grid=grid,
            in_specs=[
                pl.BlockSpec((TB, 4), lambda i: (i, 0)),       # xa (pipelined)
                pl.BlockSpec((4, 128), lambda i: (0, 0)),      # W1 (resident)
                pl.BlockSpec((128, 128), lambda i: (0, 0)),    # W2 (resident)
                pl.BlockSpec((128, 128), lambda i: (0, 0)),    # W3 (resident)
                pl.BlockSpec((3, 128), lambda i: (0, 0)),      # biases
            ],
            out_specs=pl.BlockSpec((TB, 128), lambda i: (i, 0)),
        ),
        compiler_params=pltpu.CompilerParams(
            dimension_semantics=("parallel",)),
        cost_estimate=pl.CostEstimate(
            flops=flops, transcendentals=0, bytes_accessed=bytes_accessed),
    )(xa, packed["w1"], packed["w2"], packed["w3"], packed["b"])

    q1 = out[:B, 0:1]
    q2 = out[:B, 1:2]
    return q1, q2


def init_params(key):
    """nn.Linear-style init U(-1/sqrt(fan_in), 1/sqrt(fan_in)).

    Weights stored transposed to [in_features, out_features]; biases [1, out].
    """
    shapes = {
        "sA": (3, 32), "aA": (1, 32), "qA": (64, 64), "outA": (64, 1),
        "sB": (3, 32), "aB": (1, 32), "qB": (64, 64), "outB": (64, 1),
    }
    name_map = {
        "sA": ("wsA", "bsA"), "aA": ("waA", "baA"),
        "qA": ("wqA", "bqA"), "outA": ("woA", "boA"),
        "sB": ("wsB", "bsB"), "aB": ("waB", "baB"),
        "qB": ("wqB", "bqB"), "outB": ("woB", "boB"),
    }
    params = {}
    keys = jax.random.split(key, 2 * len(shapes))
    for i, (layer, (fan_in, fan_out)) in enumerate(shapes.items()):
        bound = 1.0 / jnp.sqrt(fan_in)
        wk, bk = keys[2 * i], keys[2 * i + 1]
        wname, bname = name_map[layer]
        params[wname] = jax.random.uniform(
            wk, (fan_in, fan_out), jnp.float32, -bound, bound)
        params[bname] = jax.random.uniform(
            bk, (1, fan_out), jnp.float32, -bound, bound)
    return params


def qnet2_reference(x, a, p):
    """Plain-JAX reference (unfused, mirrors the PyTorch module exactly)."""
    def branch(ws, bs, wa, ba, wq, bq, wo, bo):
        h1 = jax.nn.relu(x @ ws + bs)
        h2 = jax.nn.relu(a @ wa + ba)
        cat = jnp.concatenate([h1, h2], axis=1)
        q = jax.nn.relu(cat @ wq + bq)
        return q @ wo + bo
    q1 = branch(p["wsA"], p["bsA"], p["waA"], p["baA"],
                p["wqA"], p["bqA"], p["woA"], p["boA"])
    q2 = branch(p["wsB"], p["bsB"], p["waB"], p["baB"],
                p["wqB"], p["bqB"], p["woB"], p["boB"])
    return q1, q2


if __name__ == "__main__":
    key = jax.random.PRNGKey(0)
    pkey, xkey, akey = jax.random.split(key, 3)

    params = init_params(pkey)
    packed = pack_params(params)

    B = 8  # Pendulum: state dim = 3, action dim = 1
    x = jax.random.normal(xkey, (B, 3), dtype=jnp.float32)
    a = jax.random.normal(akey, (B, 1), dtype=jnp.float32)

    q1, q2 = qnet2_forward(x, a, packed)
    q1 = jax.block_until_ready(q1)
    q2 = jax.block_until_ready(q2)

    q1_ref, q2_ref = qnet2_reference(x, a, params)
    assert q1.shape == (B, 1) and q2.shape == (B, 1)
    assert jnp.allclose(q1, q1_ref, atol=1e-4, rtol=1e-4)
    assert jnp.allclose(q2, q2_ref, atol=1e-4, rtol=1e-4)

    print("KERNEL_OK")
</pallas_src>

<mosaic_0001>
module attributes {stable_mosaic.version = 11 : i64} {
  func.func @qnet2_fused_kernel(%arg0: i32, %arg1: memref<8x4xf32, #tpu.memory_space<vmem>>, %arg2: memref<4x128xf32, #tpu.memory_space<vmem>>, %arg3: memref<128x128xf32, #tpu.memory_space<vmem>>, %arg4: memref<128x128xf32, #tpu.memory_space<vmem>>, %arg5: memref<3x128xf32, #tpu.memory_space<vmem>>, %arg6: memref<8x128xf32, #tpu.memory_space<vmem>>) attributes {dimension_semantics = [#tpu.dimension_semantics<parallel>], iteration_bounds = array<i64: 1>, scalar_prefetch = 0 : i64, scratch_operands = 0 : i64, tpu.core_type = #tpu.core_type<tc>, window_params = [{transform_indices = @transform_0, window_bounds = array<i64: 8, 4>}, {pipeline_mode = #tpu.pipeline_mode<synchronous>, transform_indices = @transform_1, window_bounds = array<i64: 4, 128>}, {pipeline_mode = #tpu.pipeline_mode<synchronous>, transform_indices = @transform_2, window_bounds = array<i64: 128, 128>}, {pipeline_mode = #tpu.pipeline_mode<synchronous>, transform_indices = @transform_3, window_bounds = array<i64: 128, 128>}, {pipeline_mode = #tpu.pipeline_mode<synchronous>, transform_indices = @transform_4, window_bounds = array<i64: 3, 128>}, {transform_indices = @transform_5, window_bounds = array<i64: 8, 128>}]} {
    %c0 = arith.constant 0 : index
    %c0_0 = arith.constant 0 : index
    %0 = vector.load %arg1[%c0, %c0_0] : memref<8x4xf32, #tpu.memory_space<vmem>>, vector<8x4xf32>
    %c0_1 = arith.constant 0 : index
    %c0_2 = arith.constant 0 : index
    %1 = vector.load %arg5[%c0_1, %c0_2] : memref<3x128xf32, #tpu.memory_space<vmem>>, vector<3x128xf32>
    %c0_3 = arith.constant 0 : index
    %c0_4 = arith.constant 0 : index
    %2 = vector.load %arg2[%c0_3, %c0_4] : memref<4x128xf32, #tpu.memory_space<vmem>>, vector<4x128xf32>
    %cst = arith.constant dense<0.000000e+00> : vector<8x128xf32>
    %3 = tpu.matmul %0, %2, %cst {dimension_numbers = #tpu.dot_dimension_numbers<[1], [0], [0], [1], [0, 0, 1, 1], [], []>} : vector<8x4xf32>, vector<4x128xf32>, vector<8x128xf32> -> vector<8x128xf32>
    %4 = vector.extract_strided_slice %1 {offsets = [0, 0], sizes = [1, 128], strides = [1, 1]} : vector<3x128xf32> to vector<1x128xf32>
    %5 = vector.broadcast %4 : vector<1x128xf32> to vector<8x128xf32>
    %6 = arith.addf %3, %5 : vector<8x128xf32>
    %cst_5 = arith.constant 0.000000e+00 : f32
    %7 = vector.broadcast %cst_5 : f32 to vector<8x128xf32>
    %8 = arith.maximumf %6, %7 : vector<8x128xf32>
    %c0_6 = arith.constant 0 : index
    %c0_7 = arith.constant 0 : index
    %9 = vector.load %arg3[%c0_6, %c0_7] : memref<128x128xf32, #tpu.memory_space<vmem>>, vector<128x128xf32>
    %cst_8 = arith.constant dense<0.000000e+00> : vector<8x128xf32>
    %10 = tpu.matmul %8, %9, %cst_8 {dimension_numbers = #tpu.dot_dimension_numbers<[1], [0], [0], [1], [0, 0, 1, 1], [], []>} : vector<8x128xf32>, vector<128x128xf32>, vector<8x128xf32> -> vector<8x128xf32>
    %11 = vector.extract_strided_slice %1 {offsets = [1, 0], sizes = [1, 128], strides = [1, 1]} : vector<3x128xf32> to vector<1x128xf32>
    %12 = vector.broadcast %11 : vector<1x128xf32> to vector<8x128xf32>
    %13 = arith.addf %10, %12 : vector<8x128xf32>
    %cst_9 = arith.constant 0.000000e+00 : f32
    %14 = vector.broadcast %cst_9 : f32 to vector<8x128xf32>
    %15 = arith.maximumf %13, %14 : vector<8x128xf32>
    %c0_10 = arith.constant 0 : index
    %c0_11 = arith.constant 0 : index
    %16 = vector.load %arg4[%c0_10, %c0_11] : memref<128x128xf32, #tpu.memory_space<vmem>>, vector<128x128xf32>
    %cst_12 = arith.constant dense<0.000000e+00> : vector<8x128xf32>
    %17 = tpu.matmul %15, %16, %cst_12 {dimension_numbers = #tpu.dot_dimension_numbers<[1], [0], [0], [1], [0, 0, 1, 1], [], []>} : vector<8x128xf32>, vector<128x128xf32>, vector<8x128xf32> -> vector<8x128xf32>
    %18 = vector.extract_strided_slice %1 {offsets = [2, 0], sizes = [1, 128], strides = [1, 1]} : vector<3x128xf32> to vector<1x128xf32>
    %19 = vector.broadcast %18 : vector<1x128xf32> to vector<8x128xf32>
    %20 = arith.addf %17, %19 : vector<8x128xf32>
    %c0_13 = arith.constant 0 : index
    %c0_14 = arith.constant 0 : index
    %21 = vector.load %arg6[%c0_13, %c0_14] : memref<8x128xf32, #tpu.memory_space<vmem>>, vector<8x128xf32>
    tpu.vector_store %arg6[%c0_13, %c0_14], %20 {strides = array<i32>} : memref<8x128xf32, #tpu.memory_space<vmem>>, vector<8x128xf32>,
    return
  }
  func.func @transform_0(%arg0: i32) -> (i32, i32) {
    %c0_i32 = arith.constant 0 : i32
    %c0_i32_0 = arith.constant 0 : i32
    return %arg0, %c0_i32 : i32, i32
  }
  func.func @transform_1(%arg0: i32) -> (i32, i32) {
    %c0_i32 = arith.constant 0 : i32
    %c0_i32_0 = arith.constant 0 : i32
    %c0_i32_1 = arith.constant 0 : i32
    return %c0_i32, %c0_i32_0 : i32, i32
  }
  func.func @transform_2(%arg0: i32) -> (i32, i32) {
    %c0_i32 = arith.constant 0 : i32
    %c0_i32_0 = arith.constant 0 : i32
    %c0_i32_1 = arith.constant 0 : i32
    return %c0_i32, %c0_i32_0 : i32, i32
  }
  func.func @transform_3(%arg0: i32) -> (i32, i32) {
    %c0_i32 = arith.constant 0 : i32
    %c0_i32_0 = arith.constant 0 : i32
    %c0_i32_1 = arith.constant 0 : i32
    return %c0_i32, %c0_i32_0 : i32, i32
  }
  func.func @transform_4(%arg0: i32) -> (i32, i32) {
    %c0_i32 = arith.constant 0 : i32
    %c0_i32_0 = arith.constant 0 : i32
    %c0_i32_1 = arith.constant 0 : i32
    return %c0_i32, %c0_i32_0 : i32, i32
  }
  func.func @transform_5(%arg0: i32) -> (i32, i32) {
    %c0_i32 = arith.constant 0 : i32
    %c0_i32_0 = arith.constant 0 : i32
    return %arg0, %c0_i32 : i32, i32
  }
}

</mosaic_0001>

<llo_original>
// kernel: tpu_custom_call.1
$region0: #{tpu_custom_call.1}
  #allocation0 [shape = 'u32[]', space=smem, size = 0x4, offset = 0x4, fixed_abs, tag = 'smem constant byte address 0x4 - core index']
  #allocation1 [shape = 'u32[72,128]{1,0:T(1,128)}', space=vmem, size = 0x9000, scoped, tag = 'internal scratch']
  %s0 = inlined_call_operand.vmem [shape: f32[8,4], index: 0, kind: input, shape index: {}]
  %s1 = inlined_call_operand.vmem [shape: f32[4,128], index: 1, kind: input, shape index: {}]
  %s2 = inlined_call_operand.hbm [shape: f32[128,128], index: 2, kind: input, shape index: {}]
  %s3 = inlined_call_operand.hbm [shape: f32[128,128], index: 3, kind: input, shape index: {}]
  %s4 = inlined_call_operand.vmem [shape: f32[3,128], index: 4, kind: input, shape index: {}]
  %s5 = inlined_call_operand.hbm [shape: f32[8,128], index: 5, kind: output, shape index: {}]
  %s6 = sld [smem:[#allocation0]]
  $region38: #{tpu_custom_call.1} parent=0
    _
  %s8 = ssub.s32 1, %s6
  %s9 = scalar_select 0, %s8, %s6
  $region1: #{tpu_custom_call.1} parent=0
    #allocation2 [shape = 'u8[65536]{0}', space=vmem, size = 0x10000, scoped, tag = 'input window, operand 2, single buffered']
    #allocation3 [shape = 's32[1]{0}', space=sflag, size = 0x4, scoped, tag = 'scoped memory for tpu_custom_call.1']
    #allocation4 [shape = 's32[1]{0}', space=sflag, size = 0x4, scoped, tag = 'scoped memory for tpu_custom_call.1']
    #allocation5 [shape = 'u8[65536]{0}', space=vmem, size = 0x10000, scoped, tag = 'input window, operand 3, single buffered']
    #allocation6 [shape = 's32[1]{0}', space=sflag, size = 0x4, scoped, tag = 'scoped memory for tpu_custom_call.1']
    #allocation7 [shape = 'u8[4096]{0}', space=vmem, size = 0x1000, scoped, tag = 'output window, operand 0, single buffered']
    %10 = vsyncpa [#allocation3], 0
    %11 = vsyncpa [#allocation6], 0
    %12 = vsyncpa [#allocation4], 0
    // Predicated region
    $region2: #{tpu_custom_call.1} parent=1 // pred_check
      _
    $region3: #{tpu_custom_call.1} parent=1 // pred_check_branch
      %14 = sbr.rel (0) target = $region5
    $region4: #{tpu_custom_call.1} parent=1 // pred_region
      _
    $region5: #{tpu_custom_call.1} parent=1 // pred_fallthru
      _
    // Predicated region
    $region6: #{tpu_custom_call.1} parent=1 // pred_check
      _
    $region7: #{tpu_custom_call.1} parent=1 // pred_check_branch
      %16 = sbr.rel (0) target = $region9
    $region8: #{tpu_custom_call.1} parent=1 // pred_region
      _
    $region9: #{tpu_custom_call.1} parent=1 // pred_fallthru
      _
    // Predicated region
    $region10: #{tpu_custom_call.1} parent=1 // pred_check
      _
    $region11: #{tpu_custom_call.1} parent=1 // pred_check_branch
      %18 = sbr.rel (0) target = $region13
    $region12: #{tpu_custom_call.1} parent=1 // pred_region
      %20 = vsyncadd [#allocation3], 0
      %s21 = sshll.u32 %s2, 4
      %s22 = int_to_ptr.hbm [resolvable:$true] %s21
      %s23 = sshll.u32 [#allocation2], 4
      %s24 = int_to_ptr.vmem [resolvable:$true] %s23
      %29 = dma.hbm_to_vmem [thread:$0]  %s22, 2048, %s24, [#allocation3], 128, 128, 8
    $region13: #{tpu_custom_call.1} parent=1 // pred_fallthru
      _
    // Predicated region
    $region14: #{tpu_custom_call.1} parent=1 // pred_check
      _
    $region15: #{tpu_custom_call.1} parent=1 // pred_check_branch
      %31 = sbr.rel (0) target = $region17
    $region16: #{tpu_custom_call.1} parent=1 // pred_region
      %33 = vsyncadd [#allocation6], 0
      %s34 = sshll.u32 %s3, 4
      %s35 = int_to_ptr.hbm [resolvable:$true] %s34
      %s36 = sshll.u32 [#allocation5], 4
      %s37 = int_to_ptr.vmem [resolvable:$true] %s36
      %42 = dma.hbm_to_vmem [thread:$0]  %s35, 2048, %s37, [#allocation6], 128, 128, 8
    $region17: #{tpu_custom_call.1} parent=1 // pred_fallthru
      _
    // Predicated region
    $region18: #{tpu_custom_call.1} parent=1 // pred_check
      _
    $region19: #{tpu_custom_call.1} parent=1 // pred_check_branch
      %44 = sbr.rel (0) target = $region21
    $region20: #{tpu_custom_call.1} parent=1 // pred_region
      _
    $region21: #{tpu_custom_call.1} parent=1 // pred_fallthru
      _
    // Predicated region
    $region22: #{tpu_custom_call.1} parent=1 // pred_check
      _
    $region23: #{tpu_custom_call.1} parent=1 // pred_check_branch
      %46 = sbr.rel (0) target = $region25
    $region24: #{tpu_custom_call.1} parent=1 // pred_region
      %48 = dma.done [#allocation3], 2048
    $region25: #{tpu_custom_call.1} parent=1 // pred_fallthru
      _
    // Predicated region
    $region26: #{tpu_custom_call.1} parent=1 // pred_check
      _
    $region27: #{tpu_custom_call.1} parent=1 // pred_check_branch
      %50 = sbr.rel (0) target = $region29
    $region28: #{tpu_custom_call.1} parent=1 // pred_region
      %52 = dma.done [#allocation6], 2048
    $region29: #{tpu_custom_call.1} parent=1 // pred_fallthru
      _
    %v53 = vld [vmem:[%s0] sm:$0xff]
    %v54 = vld [vmem:[%s4] sm:$0x7]
    %v55 = vld [vmem:[%s1] sm:$0xf]
    %v56 = vperm.slane %v54, 0
    %vm57 = vcmask 31744
    %v59 = vsel %vm57, %v53, 0
    %vm61 = vcmask 1043456
    %v63 = vsel %vm61, %v55, 0
    %65 = vmatpush.msra.mxu0 0.0
    %66 = vmatpush.msra.mxu0 0.0
    %67 = vmatpush.msra.mxu0 0.0
    %68 = vmatpush.msra.mxu0 0.0
    %69 = vmatpush.msra.mxu0 0.0
    %70 = vmatpush.msra.mxu0 0.0
    %71 = vmatpush.msra.mxu0 0.0
    %72 = vmatpush.msra.mxu0 0.0
    %73 = vmatpush.msra.mxu0 0.0
    %74 = vmatpush.msra.mxu0 0.0
    %75 = vmatpush.msra.mxu0 0.0
    %76 = vmatpush.msra.mxu0 0.0
    %77 = vmatpush.msra.mxu0 0.0
    %78 = vmatpush.msra.mxu0 0.0
    %79 = vmatpush.msra.mxu0 0.0
    %80 = vmatpush.msra.mxu0 %v63
    %81 = vmatmul.f32.gmra.mxu0 %v59
    %v82 = vpop.f32.mrf.mxu0
    %v83 = vadd.f32 %v56, %v82
    %84 = vdwg.mxu0
    %v85 = vmax.f32 %v83, 0.0
    %v86 = vld [vmem:[#allocation2] sm:$0xff]
    %v87 = vld [vmem:[#allocation2 + $0x8] sm:$0xff]
    %v88 = vld [vmem:[#allocation2 + $0x10] sm:$0xff]
    %v89 = vld [vmem:[#allocation2 + $0x18] sm:$0xff]
    %v90 = vld [vmem:[#allocation2 + $0x20] sm:$0xff]
    %v91 = vld [vmem:[#allocation2 + $0x28] sm:$0xff]
    %v92 = vld [vmem:[#allocation2 + $0x30] sm:$0xff]
    %v93 = vld [vmem:[#allocation2 + $0x38] sm:$0xff]
    %v94 = vld [vmem:[#allocation2 + $0x40] sm:$0xff]
    %v95 = vld [vmem:[#allocation2 + $0x48] sm:$0xff]
    %v96 = vld [vmem:[#allocation2 + $0x50] sm:$0xff]
    %v97 = vld [vmem:[#allocation2 + $0x58] sm:$0xff]
    %v98 = vld [vmem:[#allocation2 + $0x60] sm:$0xff]
    %v99 = vld [vmem:[#allocation2 + $0x68] sm:$0xff]
    %v100 = vld [vmem:[#allocation2 + $0x70] sm:$0xff]
    %v101 = vld [vmem:[#allocation2 + $0x78] sm:$0xff]
    %v102 = vperm.slane %v54, 1
    %103 = vmatpush.msra.mxu0 %v101
    %104 = vmatpush.msra.mxu0 %v100
    %105 = vmatpush.msra.mxu0 %v99
    %106 = vmatpush.msra.mxu0 %v98
    %107 = vmatpush.msra.mxu0 %v97
    %108 = vmatpush.msra.mxu0 %v96
    %109 = vmatpush.msra.mxu0 %v95
    %110 = vmatpush.msra.mxu0 %v94
    %111 = vmatpush.msra.mxu0 %v93
    %112 = vmatpush.msra.mxu0 %v92
    %113 = vmatpush.msra.mxu0 %v91
    %114 = vmatpush.msra.mxu0 %v90
    %115 = vmatpush.msra.mxu0 %v89
    %116 = vmatpush.msra.mxu0 %v88
    %117 = vmatpush.msra.mxu0 %v87
    %118 = vmatpush.msra.mxu0 %v86
    %119 = vmatmul.f32.gmra.mxu0 %v85
    %v120 = vpop.f32.mrf.mxu0
    %v121 = vadd.f32 %v102, %v120
    %122 = vdwg.mxu0
    %v123 = vmax.f32 %v121, 0.0
    %v124 = vld [vmem:[#allocation5] sm:$0xff]
    %v125 = vld [vmem:[#allocation5 + $0x8] sm:$0xff]
    %v126 = vld [vmem:[#allocation5 + $0x10] sm:$0xff]
    %v127 = vld [vmem:[#allocation5 + $0x18] sm:$0xff]
    %v128 = vld [vmem:[#allocation5 + $0x20] sm:$0xff]
    %v129 = vld [vmem:[#allocation5 + $0x28] sm:$0xff]
    %v130 = vld [vmem:[#allocation5 + $0x30] sm:$0xff]
    %v131 = vld [vmem:[#allocation5 + $0x38] sm:$0xff]
    %v132 = vld [vmem:[#allocation5 + $0x40] sm:$0xff]
    %v133 = vld [vmem:[#allocation5 + $0x48] sm:$0xff]
    %v134 = vld [vmem:[#allocation5 + $0x50] sm:$0xff]
    %v135 = vld [vmem:[#allocation5 + $0x58] sm:$0xff]
    %v136 = vld [vmem:[#allocation5 + $0x60] sm:$0xff]
    %v137 = vld [vmem:[#allocation5 + $0x68] sm:$0xff]
    %v138 = vld [vmem:[#allocation5 + $0x70] sm:$0xff]
    %v139 = vld [vmem:[#allocation5 + $0x78] sm:$0xff]
    %v140 = vperm.slane %v54, 2
    %141 = vmatpush.msra.mxu0 %v139
    %142 = vmatpush.msra.mxu0 %v138
    %143 = vmatpush.msra.mxu0 %v137
    %144 = vmatpush.msra.mxu0 %v136
    %145 = vmatpush.msra.mxu0 %v135
    %146 = vmatpush.msra.mxu0 %v134
    %147 = vmatpush.msra.mxu0 %v133
    %148 = vmatpush.msra.mxu0 %v132
    %149 = vmatpush.msra.mxu0 %v131
    %150 = vmatpush.msra.mxu0 %v130
    %151 = vmatpush.msra.mxu0 %v129
    %152 = vmatpush.msra.mxu0 %v128
    %153 = vmatpush.msra.mxu0 %v127
    %154 = vmatpush.msra.mxu0 %v126
    %155 = vmatpush.msra.mxu0 %v125
    %156 = vmatpush.msra.mxu0 %v124
    %157 = vmatmul.f32.gmra.mxu0 %v123
    %v158 = vpop.f32.mrf.mxu0
    %v159 = vadd.f32 %v140, %v158
    %160 = vdwg.mxu0
    %161 = vst [vmem:[#allocation7] sm:$0xff] %v159
    // Predicated region
    $region30: #{tpu_custom_call.1} parent=1 // pred_check
      _
    $region31: #{tpu_custom_call.1} parent=1 // pred_check_branch
      %163 = sbr.rel (0) target = $region33
    $region32: #{tpu_custom_call.1} parent=1 // pred_region
      %165 = vsyncadd [#allocation4], 0
      %s167 = sshll.u32 [#allocation7], 4
      %s168 = int_to_ptr.vmem [resolvable:$true] %s167
      %s169 = sshll.u32 %s5, 4
      %s170 = int_to_ptr.hbm [resolvable:$true] %s169
      %172 = dma.vmem_to_hbm [thread:$0]  %s168, 128, %s170, [#allocation4]
    $region33: #{tpu_custom_call.1} parent=1 // pred_fallthru
      _
    // Predicated region
    $region34: #{tpu_custom_call.1} parent=1 // pred_check
      _
    $region35: #{tpu_custom_call.1} parent=1 // pred_check_branch
      %174 = sbr.rel (0) target = $region37
    $region36: #{tpu_custom_call.1} parent=1 // pred_region
      %176 = dma.done [#allocation4], 128
    $region37: #{tpu_custom_call.1} parent=1 // pred_fallthru
      _
    %177 = vsyncpa [#allocation3], 1
    %178 = vsyncpa [#allocation6], 1
    %179 = vsyncpa [#allocation4], 1

</llo_original>
